<compile_context>
chip_gen: v5e
topology: v5e:2x2
jax: 0.10.0
libtpu: 0.0.40
codegen_flags: <defaults>
</compile_context>

<pallas_src>
import jax
import jax.numpy as jnp
from jax.experimental import pallas as pl
from jax.experimental.pallas import tpu as pltpu


def _conv1x1_lrelu_kernel(x_ref, w_ref, o_ref):
    # x_ref: (C_in, TS)   spatial tile (lane dim = spatial, multiple of 128)
    # w_ref: (C_out, C_in) resident 8x8 weight
    # o_ref: (C_out, TS)
    y = jnp.dot(w_ref[...], x_ref[...], preferred_element_type=jnp.float32)
    # LeakyReLU(0.1)
    o_ref[...] = jnp.where(y > 0, y, jnp.float32(0.1) * y).astype(o_ref.dtype)


def _round_up(x, m):
    return (x + m - 1) // m * m


def conv_upsample_forward(x_nchw, weight_oi, *, max_tile_s=4096):
    """Forward pass of ConvUpsample.

    x_nchw:    (N, C_in, H, W)  float32
    weight_oi: (C_out, C_in)    float32  (Conv2d(8,8,1,bias=False) weight squeezed)
    returns:   (N, C_out, H, W) float32
    """
    N, C_in, H, W = x_nchw.shape
    C_out = weight_oi.shape[0]
    HW = H * W

    # Free reshape: NCHW kept as-is, spatial flattened into the last (lane) dim.
    x3 = x_nchw.reshape(N, C_in, HW)

    # Lane-aligned spatial tile; pad only when needed (no divisibility assert).
    if _round_up(HW, 128) <= max_tile_s:
        tile_s = _round_up(HW, 128)
    else:
        tile_s = max_tile_s  # multiple of 128; 8*4096*4B = 128 KiB per buffer
    HW_pad = _round_up(HW, tile_s)
    if HW_pad != HW:
        x3 = jnp.pad(x3, ((0, 0), (0, 0), (0, HW_pad - HW)))

    grid = (N, HW_pad // tile_s)

    itemsize = jnp.dtype(x_nchw.dtype).itemsize
    cost = pl.CostEstimate(
        flops=2 * N * HW * C_in * C_out,
        transcendentals=0,
        bytes_accessed=(N * HW * (C_in + C_out) + C_in * C_out) * itemsize,
    )

    out3 = pl.pallas_call(
        _conv1x1_lrelu_kernel,
        out_shape=jax.ShapeDtypeStruct((N, C_out, HW_pad), x_nchw.dtype),
        grid_spec=pltpu.PrefetchScalarGridSpec(
            num_scalar_prefetch=0,
            grid=grid,
            in_specs=[
                # batch dim squeezed; channels full-extent; spatial tiled (lane dense)
                pl.BlockSpec((None, C_in, tile_s), lambda n, s: (n, 0, s)),
                # full 8x8 weight, constant block index -> fetched once, resident
                pl.BlockSpec((C_out, C_in), lambda n, s: (0, 0)),
            ],
            out_specs=pl.BlockSpec((None, C_out, tile_s), lambda n, s: (n, 0, s)),
        ),
        compiler_params=pltpu.CompilerParams(
            dimension_semantics=("parallel", "parallel"),
        ),
        cost_estimate=cost,
    )(x3, weight_oi)

    if HW_pad != HW:
        out3 = out3[:, :, :HW]

    # F.interpolate(x, size=(H, W), mode='nearest') with identical H, W is the
    # identity map, so no further op is emitted.
    return out3.reshape(N, C_out, H, W)


def _reference_forward(x_nchw, weight_oi):
    # Pure-JAX reference for correctness checking.
    y = jnp.einsum("nchw,oc->nohw", x_nchw, weight_oi)
    return jnp.where(y > 0, y, 0.1 * y)


if __name__ == "__main__":
    key = jax.random.PRNGKey(0)
    kx, kw = jax.random.split(key)

    # Small shapes consistent with the module: Conv2d expects 8 input channels.
    N, C, H, W = 2, 8, 16, 16
    x = jax.random.normal(kx, (N, C, H, W), dtype=jnp.float32)

    # Deterministic Conv2d(8, 8, 1, bias=False) weight: (C_out, C_in, 1, 1) -> (C_out, C_in)
    w = (jax.random.normal(kw, (8, 8, 1, 1), dtype=jnp.float32) * 0.1).reshape(8, 8)

    out = jax.block_until_ready(conv_upsample_forward(x, w))

    ref = _reference_forward(x, w)
    assert out.shape == (N, 8, H, W)
    assert jnp.allclose(out, ref, atol=1e-5, rtol=1e-5)

    print("KERNEL_OK")
</pallas_src>

<mosaic_0001>
module attributes {stable_mosaic.version = 11 : i64} {
  func.func @_conv1x1_lrelu_kernel(%arg0: i32, %arg1: i32, %arg2: memref<1x8x256xf32, #tpu.memory_space<vmem>>, %arg3: memref<8x8xf32, #tpu.memory_space<vmem>>, %arg4: memref<1x8x256xf32, #tpu.memory_space<vmem>>) attributes {dimension_semantics = [#tpu.dimension_semantics<parallel>, #tpu.dimension_semantics<parallel>], iteration_bounds = array<i64: 2, 1>, scalar_prefetch = 0 : i64, scratch_operands = 0 : i64, tpu.core_type = #tpu.core_type<tc>, window_params = [{transform_indices = @transform_0, window_bounds = array<i64: 1, 8, 256>}, {pipeline_mode = #tpu.pipeline_mode<synchronous>, transform_indices = @transform_1, window_bounds = array<i64: 8, 8>}, {transform_indices = @transform_2, window_bounds = array<i64: 1, 8, 256>}]} {
    %c0 = arith.constant 0 : index
    %c0_0 = arith.constant 0 : index
    %0 = vector.load %arg3[%c0, %c0_0] : memref<8x8xf32, #tpu.memory_space<vmem>>, vector<8x8xf32>
    %c0_1 = arith.constant 0 : index
    %c0_2 = arith.constant 0 : index
    %c0_3 = arith.constant 0 : index
    %1 = vector.load %arg2[%c0_1, %c0_2, %c0_3] : memref<1x8x256xf32, #tpu.memory_space<vmem>>, vector<1x8x256xf32>
    %2 = vector.shape_cast %1 : vector<1x8x256xf32> to vector<8x256xf32>
    %cst = arith.constant dense<0.000000e+00> : vector<8x256xf32>
    %3 = tpu.matmul %0, %2, %cst {dimension_numbers = #tpu.dot_dimension_numbers<[1], [0], [0], [1], [0, 0, 1, 1], [], []>} : vector<8x8xf32>, vector<8x256xf32>, vector<8x256xf32> -> vector<8x256xf32>
    %cst_4 = arith.constant 0.000000e+00 : f32
    %4 = vector.broadcast %cst_4 : f32 to vector<8x256xf32>
    %5 = arith.cmpf ogt, %3, %4 : vector<8x256xf32>
    %cst_5 = arith.constant 1.000000e-01 : f32
    %6 = vector.broadcast %cst_5 : f32 to vector<8x256xf32>
    %7 = arith.mulf %6, %3 : vector<8x256xf32>
    %8 = arith.select %5, %3, %7 : vector<8x256xi1>, vector<8x256xf32>
    %c0_6 = arith.constant 0 : index
    %c0_7 = arith.constant 0 : index
    %c0_8 = arith.constant 0 : index
    %9 = vector.load %arg4[%c0_6, %c0_7, %c0_8] : memref<1x8x256xf32, #tpu.memory_space<vmem>>, vector<1x8x256xf32>
    %10 = vector.shape_cast %9 : vector<1x8x256xf32> to vector<8x256xf32>
    %11 = vector.shape_cast %8 : vector<8x256xf32> to vector<1x8x256xf32>
    tpu.vector_store %arg4[%c0_6, %c0_7, %c0_8], %11 {strides = array<i32>} : memref<1x8x256xf32, #tpu.memory_space<vmem>>, vector<1x8x256xf32>,
    return
  }
  func.func @transform_0(%arg0: i32, %arg1: i32) -> (i32, i32, i32) {
    %c0_i32 = arith.constant 0 : i32
    %c0_i32_0 = arith.constant 0 : i32
    return %arg0, %c0_i32, %arg1 : i32, i32, i32
  }
  func.func @transform_1(%arg0: i32, %arg1: i32) -> (i32, i32) {
    %c0_i32 = arith.constant 0 : i32
    %c0_i32_0 = arith.constant 0 : i32
    %c0_i32_1 = arith.constant 0 : i32
    return %c0_i32, %c0_i32_0 : i32, i32
  }
  func.func @transform_2(%arg0: i32, %arg1: i32) -> (i32, i32, i32) {
    %c0_i32 = arith.constant 0 : i32
    %c0_i32_0 = arith.constant 0 : i32
    return %arg0, %c0_i32, %arg1 : i32, i32, i32
  }
}

</mosaic_0001>

<llo_original>
// kernel: tpu_custom_call.1
$region0: #{tpu_custom_call.1}
  #allocation0 [shape = 'u32[]', space=smem, size = 0x4, offset = 0x4, fixed_abs, tag = 'smem constant byte address 0x4 - core index']
  #allocation1 [shape = 'u32[72,128]{1,0:T(1,128)}', space=vmem, size = 0x9000, scoped, tag = 'internal scratch']
  %s0 = inlined_call_operand.hbm [shape: f32[2,8,256], index: 0, kind: input, shape index: {}]
  %s1 = inlined_call_operand.hbm [shape: f32[8,8], index: 1, kind: input, shape index: {}]
  %s2 = inlined_call_operand.hbm [shape: f32[2,8,256], index: 2, kind: output, shape index: {}]
  %s3 = sld [smem:[#allocation0]]
  $region49: #{tpu_custom_call.1} parent=0
    _
  %s5 = ssub.s32 1, %s3
  %s6 = scalar_select 0, %s5, %s3
  $region1: #{tpu_custom_call.1} parent=0
    #allocation2 [shape = 'u8[16384]{0}', space=vmem, size = 0x4000, scoped, tag = 'input window, operand 0']
    #allocation3 [shape = 's32[2]{0}', space=sflag, size = 0x8, scoped, tag = 'scoped memory for tpu_custom_call.1']
    #allocation4 [shape = 's32[2]{0}', space=sflag, size = 0x8, scoped, tag = 'scoped memory for tpu_custom_call.1']
    #allocation5 [shape = 'u8[4096]{0}', space=vmem, size = 0x1000, scoped, tag = 'input window, operand 1, single buffered']
    #allocation6 [shape = 's32[1]{0}', space=sflag, size = 0x4, scoped, tag = 'scoped memory for tpu_custom_call.1']
    #allocation7 [shape = 'u8[16384]{0}', space=vmem, size = 0x4000, scoped, tag = 'output window, operand 0']
    %7 = vsyncpa [#allocation3], 0
    %s8 = scalar_lea.sflag [#allocation3], 1
    %9 = vsyncpa %s8, 0
    %10 = vsyncpa [#allocation6], 0
    %11 = vsyncpa [#allocation4], 0
    %s12 = scalar_lea.sflag [#allocation4], 1
    %13 = vsyncpa %s12, 0
    loop: start=0, step=1, limit=4
    $region2: #{tpu_custom_call.1} parent=1 // loop_pre_header
      _
    $region3: #{tpu_custom_call.1} parent=1 // loop_header
      %s15 = sphi 0, %s19
      %p16 = scmp.ge.s32.totalorder %s15, 4
      %s22 = sphi 0, %s34
      %s23 = sphi 0, %s30
      %s24 = sphi 0, %s22
      %s25 = sphi 0, %s23
      %s26 = sphi 0, %s24
      %s27 = sphi 0, %s25
      %s39 = sphi 0, %s41
      %s42 = sphi 0, %s39
      %s43 = sphi 0, %s42
      %s59 = sphi 0, %s43
      %s63 = sphi 0, %s63
      %s65 = sphi 0, %s63
      %s66 = sphi 0, %s65
      %s80 = sphi 0, %s66
      %s88 = sphi 0, %s90
      %s91 = sphi 0, %s88
      %s92 = sphi 0, %s91
      %s108 = sphi 0, %s92
    $region4: #{tpu_custom_call.1} parent=1 // loop_header_branch
      %18 = sbr.rel (%p16) target = $region8
    $region5: #{tpu_custom_call.1} parent=1 // loop_body
      %s20 = ssub.s32 %s15, 1
      %s21 = ssub.s32 %s15, 2
      %s28 = sadd.s32 1, %s23
      %p29 = scmp.ge.s32.totalorder %s28, 1
      %s30 = scalar_select %p29, 0, %s28
      %s31 = sadd.s32 1, %s22
      %s32 = scalar_select %p29, %s31, %s22
      %p33 = scmp.ge.s32.totalorder %s32, 2
      %s34 = scalar_select %p33, 0, %s32
      %s35 = ssub.s32 %s22, %s34
      %s36 = ssub.s32 %s23, %s30
      %s37 = sor.u32 %s35, %s36
      %p38 = scmp.eq.s32.totalorder %s37, 0
      %s40 = sadd.s32 %s39, 1
      %s41 = scalar_select %p38, %s39, %s40
      %p44 = pneg %p38
      %p45 = scmp.eq.s32.totalorder %s15, 1
      %p46 = por %p44, %p45
      %p47 = scmp.ne.s32.totalorder %s39, %s42
      %p48 = scmp.eq.s32.totalorder %s15, 0
      %p49 = por %p47, %p48
      %p50 = scmp.ne.s32.totalorder %s39, %s42
      %p51 = scmp.eq.s32.totalorder %s20, 1
      %p52 = por %p50, %p51
      %p53 = scmp.ne.s32.totalorder %s42, %s43
      %p54 = scmp.eq.s32.totalorder %s20, 0
      %p55 = por %p53, %p54
      %p56 = scmp.ne.s32.totalorder %s42, %s43
      %p57 = scmp.eq.s32.totalorder %s21, 1
      %p58 = por %p56, %p57
      %p60 = scmp.ne.s32.totalorder %s43, %s59
      %p61 = scmp.eq.s32.totalorder %s21, 0
      %p62 = por %p60, %p61
      %s64 = sadd.s32 %s63, 1
      %p67 = scmp.eq.s32.totalorder %s15, 1
      %p68 = scmp.ne.s32.totalorder %s63, %s65
      %p69 = scmp.eq.s32.totalorder %s15, 0
      %p70 = por %p68, %p69
      %p71 = scmp.ne.s32.totalorder %s63, %s65
      %p72 = scmp.eq.s32.totalorder %s20, 1
      %p73 = por %p71, %p72
      %p74 = scmp.ne.s32.totalorder %s65, %s66
      %p75 = scmp.eq.s32.totalorder %s20, 0
      %p76 = por %p74, %p75
      %p77 = scmp.ne.s32.totalorder %s65, %s66
      %p78 = scmp.eq.s32.totalorder %s21, 1
      %p79 = por %p77, %p78
      %p81 = scmp.ne.s32.totalorder %s66, %s80
      %p82 = scmp.eq.s32.totalorder %s21, 0
      %p83 = por %p81, %p82
      %s84 = ssub.s32 %s22, %s34
      %s85 = ssub.s32 %s23, %s30
      %s86 = sor.u32 %s84, %s85
      %p87 = scmp.eq.s32.totalorder %s86, 0
      %s89 = sadd.s32 %s88, 1
      %s90 = scalar_select %p87, %s88, %s89
      %p93 = pneg %p87
      %p94 = scmp.eq.s32.totalorder %s15, 1
      %p95 = por %p93, %p94
      %p96 = scmp.ne.s32.totalorder %s88, %s91
      %p97 = scmp.eq.s32.totalorder %s15, 0
      %p98 = por %p96, %p97
      %p99 = scmp.ne.s32.totalorder %s88, %s91
      %p100 = scmp.eq.s32.totalorder %s20, 1
      %p101 = por %p99, %p100
      %p102 = scmp.ne.s32.totalorder %s91, %s92
      %p103 = scmp.eq.s32.totalorder %s20, 0
      %p104 = por %p102, %p103
      %p105 = scmp.ne.s32.totalorder %s91, %s92
      %p106 = scmp.eq.s32.totalorder %s21, 1
      %p107 = por %p105, %p106
      %p109 = scmp.ne.s32.totalorder %s92, %s108
      %p110 = scmp.eq.s32.totalorder %s21, 0
      %p111 = por %p109, %p110
      %p112 = scmp.le.s32.totalorder 1, %s15
      %p113 = scmp.lt.s32.totalorder %s15, 3
      %p114 = pnand %p112, %p113
      %p115 = pneg %p114
      // Predicated region
      $region9: #{tpu_custom_call.1} parent=5 // pred_check
        _
      $region10: #{tpu_custom_call.1} parent=5 // pred_check_branch
        %117 = sbr.rel (%p114) target = $region12
      $region11: #{tpu_custom_call.1} parent=5 // pred_region
        %s118 = ssub.s32 %s15, 1
        // Predicated region
        $region13: #{tpu_custom_call.1} parent=11 // pred_check
          %p119 = pneg %p76
        $region14: #{tpu_custom_call.1} parent=11 // pred_check_branch
          %121 = sbr.rel (%p119) target = $region16
        $region15: #{tpu_custom_call.1} parent=11 // pred_region
          %123 = vsyncadd [#allocation6], 0
          %s125 = sshll.u32 %s1, 4
          %s126 = int_to_ptr.hbm [resolvable:$true] %s125
          %s127 = sshll.u32 [#allocation5], 4
          %s128 = int_to_ptr.vmem [resolvable:$true] %s127
          %130 = dma.hbm_to_vmem [thread:$0]  %s126, 128, %s128, [#allocation6]
        $region16: #{tpu_custom_call.1} parent=11 // pred_fallthru
          _
      $region12: #{tpu_custom_call.1} parent=5 // pred_fallthru
        _
      %p131 = scmp.lt.s32.totalorder %s15, 2
      // Predicated region
      $region17: #{tpu_custom_call.1} parent=5 // pred_check
        %p132 = pneg %p131
      $region18: #{tpu_custom_call.1} parent=5 // pred_check_branch
        %134 = sbr.rel (%p132) target = $region20
      $region19: #{tpu_custom_call.1} parent=5 // pred_region
        // Predicated region
        $region21: #{tpu_custom_call.1} parent=19 // pred_check
          %p135 = pneg %p49
        $region22: #{tpu_custom_call.1} parent=19 // pred_check_branch
          %137 = sbr.rel (%p135) target = $region24
        $region23: #{tpu_custom_call.1} parent=19 // pred_region
          %s138 = sand.u32 %s39, 1
          %s139 = scalar_lea.sflag [#allocation3], %s138
          %s140 = sand.u32 %s39, 1
          %s141 = smul.addr %s140, 16
          %s142 = scalar_lea.vmem [#allocation2], %s141
          %s143 = smul.u32 2, %s23
          %145 = vsyncadd %s139, 0
          %s146 = smul.addr %s22, 2
          %s147 = sadd.s32 %s143, %s146
          %s148 = smul.addr %s147, 8
          %s149 = scalar_lea.hbm %s0, %s148
          %s151 = sshll.u32 %s149, 4
          %s152 = int_to_ptr.hbm [resolvable:$true] %s151
          %s153 = sshll.u32 %s142, 4
          %s154 = int_to_ptr.vmem [resolvable:$true] %s153
          %156 = dma.hbm_to_vmem [thread:$0]  %s152, 256, %s154, %s139
        $region24: #{tpu_custom_call.1} parent=19 // pred_fallthru
          _
      $region20: #{tpu_custom_call.1} parent=5 // pred_fallthru
        _
      %p157 = scmp.le.s32.totalorder 1, %s15
      %p158 = scmp.lt.s32.totalorder %s15, 3
      %p159 = pnand %p157, %p158
      %p160 = pneg %p159
      // Predicated region
      $region25: #{tpu_custom_call.1} parent=5 // pred_check
        _
      $region26: #{tpu_custom_call.1} parent=5 // pred_check_branch
        %162 = sbr.rel (%p159) target = $region28
      $region27: #{tpu_custom_call.1} parent=5 // pred_region
        %s163 = ssub.s32 %s15, 1
        %s164 = sand.u32 %s42, 1
        %s165 = scalar_lea.sflag [#allocation3], %s164
        %s166 = sand.u32 %s42, 1
        %s167 = smul.addr %s166, 16
        %s168 = scalar_lea.vmem [#allocation2], %s167
        // Predicated region
        $region29: #{tpu_custom_call.1} parent=27 // pred_check
          %p169 = pneg %p55
        $region30: #{tpu_custom_call.1} parent=27 // pred_check_branch
          %171 = sbr.rel (%p169) target = $region32
        $region31: #{tpu_custom_call.1} parent=27 // pred_region
          %173 = dma.done %s165, 256
        $region32: #{tpu_custom_call.1} parent=27 // pred_fallthru
          _
        // Predicated region
        $region33: #{tpu_custom_call.1} parent=27 // pred_check
          %p174 = pneg %p76
        $region34: #{tpu_custom_call.1} parent=27 // pred_check_branch
          %176 = sbr.rel (%p174) target = $region36
        $region35: #{tpu_custom_call.1} parent=27 // pred_region
          %178 = dma.done [#allocation6], 128
        $region36: #{tpu_custom_call.1} parent=27 // pred_fallthru
          _
        %s179 = sand.u32 %s42, 1
        %s180 = scalar_lea.sflag [#allocation3], %s179
        %s181 = sand.u32 %s42, 1
        %s182 = smul.addr %s181, 16
        %s183 = scalar_lea.vmem [#allocation2], %s182
        %p184 = pneg %p55
        %p185 = pneg %p52
        %p186 = pneg %p76
        %p187 = pneg %p73
        %p188 = pneg %p104
        %p189 = pneg %p101
        %s190 = sand.u32 %s91, 1
        %s191 = scalar_lea.sflag [#allocation4], %s190
        %s192 = sand.u32 %s91, 1
        %s193 = smul.addr %s192, 16
        %s194 = scalar_lea.vmem [#allocation7], %s193
        %s195 = smul.u32 2, %s25
        %s196 = smul.u32 2, %s25
        %v197 = vld [vmem:[#allocation5] sm:$0xff]
        %v198 = vld [vmem:[%s168] sm:$0xff]
        %v199 = vld [vmem:[%s168 + $0x8] sm:$0xff]
        %vm200 = vcmask 64512
        %v202 = vsel %vm200, %v197, 0
        %204 = vmatpush.msra.mxu0 0.0
        %205 = vmatpush.msra.mxu0 0.0
        %206 = vmatpush.msra.mxu0 0.0
        %207 = vmatpush.msra.mxu0 0.0
        %208 = vmatpush.msra.mxu0 0.0
        %209 = vmatpush.msra.mxu0 0.0
        %210 = vmatpush.msra.mxu0 0.0
        %211 = vmatpush.msra.mxu0 0.0
        %212 = vmatpush.msra.mxu0 0.0
        %213 = vmatpush.msra.mxu0 0.0
        %214 = vmatpush.msra.mxu0 0.0
        %215 = vmatpush.msra.mxu0 0.0
        %216 = vmatpush.msra.mxu0 0.0
        %217 = vmatpush.msra.mxu0 0.0
        %218 = vmatpush.msra.mxu0 0.0
        %219 = vmatpush.msra.mxu0 %v198
        %220 = vmatmul.f32.gmra.mxu0 %v202
        %v221 = vpop.f32.mrf.mxu0
        %v222 = vadd.f32 0.0, %v221
        %223 = vdwg.mxu0
        %224 = vmatpush.msra.mxu0 0.0
        %225 = vmatpush.msra.mxu0 0.0
        %226 = vmatpush.msra.mxu0 0.0
        %227 = vmatpush.msra.mxu0 0.0
        %228 = vmatpush.msra.mxu0 0.0
        %229 = vmatpush.msra.mxu0 0.0
        %230 = vmatpush.msra.mxu0 0.0
        %231 = vmatpush.msra.mxu0 0.0
        %232 = vmatpush.msra.mxu0 0.0
        %233 = vmatpush.msra.mxu0 0.0
        %234 = vmatpush.msra.mxu0 0.0
        %235 = vmatpush.msra.mxu0 0.0
        %236 = vmatpush.msra.mxu0 0.0
        %237 = vmatpush.msra.mxu0 0.0
        %238 = vmatpush.msra.mxu0 0.0
        %239 = vmatpush.msra.mxu0 %v199
        %240 = vmatmul.f32.gmra.mxu0 %v202
        %v241 = vpop.f32.mrf.mxu0
        %v242 = vadd.f32 0.0, %v241
        %243 = vdwg.mxu0
        %vm244 = vcmp.gt.f32.partialorder %v222, 0.0
        %vm245 = vcmp.gt.f32.partialorder %v242, 0.0
        %v246 = vmul.f32 %v222, 0.1
        %v247 = vmul.f32 %v242, 0.1
        %v248 = vsel %vm244, %v222, %v246
        %v249 = vsel %vm245, %v242, %v247
        %250 = vst [vmem:[%s194] sm:$0xff] %v248
        %251 = vst [vmem:[%s194 + $0x8] sm:$0xff] %v249
        %s252 = sand.u32 %s91, 1
        %s253 = scalar_lea.sflag [#allocation4], %s252
        %s254 = sand.u32 %s91, 1
        %s255 = smul.addr %s254, 16
        %s256 = scalar_lea.vmem [#allocation7], %s255
        // Predicated region
        $region37: #{tpu_custom_call.1} parent=27 // pred_check
          %p257 = pneg %p101
        $region38: #{tpu_custom_call.1} parent=27 // pred_check_branch
          %259 = sbr.rel (%p257) target = $region40
        $region39: #{tpu_custom_call.1} parent=27 // pred_region
          %s260 = smul.u32 2, %s25
          %262 = vsyncadd %s253, 0
          %s263 = smul.addr %s24, 2
          %s264 = sadd.s32 %s260, %s263
          %s265 = smul.addr %s264, 8
          %s266 = scalar_lea.hbm %s2, %s265
          %s268 = sshll.u32 %s256, 4
          %s269 = int_to_ptr.vmem [resolvable:$true] %s268
          %s270 = sshll.u32 %s266, 4
          %s271 = int_to_ptr.hbm [resolvable:$true] %s270
          %273 = dma.vmem_to_hbm [thread:$0]  %s269, 256, %s271, %s253
        $region40: #{tpu_custom_call.1} parent=27 // pred_fallthru
          _
      $region28: #{tpu_custom_call.1} parent=5 // pred_fallthru
        _
      %p274 = scmp.le.s32.totalorder 2, %s15
      // Predicated region
      $region41: #{tpu_custom_call.1} parent=5 // pred_check
        %p275 = pneg %p274
      $region42: #{tpu_custom_call.1} parent=5 // pred_check_branch
        %277 = sbr.rel (%p275) target = $region44
      $region43: #{tpu_custom_call.1} parent=5 // pred_region
        %s278 = ssub.s32 %s15, 2
        // Predicated region
        $region45: #{tpu_custom_call.1} parent=43 // pred_check
          %p279 = pneg %p107
        $region46: #{tpu_custom_call.1} parent=43 // pred_check_branch
          %281 = sbr.rel (%p279) target = $region48
        $region47: #{tpu_custom_call.1} parent=43 // pred_region
          %s282 = sand.u32 %s92, 1
          %s283 = scalar_lea.sflag [#allocation4], %s282
          %s284 = sand.u32 %s92, 1
          %s285 = smul.addr %s284, 16
          %s286 = scalar_lea.vmem [#allocation7], %s285
          %288 = dma.done %s283, 256
        $region48: #{tpu_custom_call.1} parent=43 // pred_fallthru
          _
      $region44: #{tpu_custom_call.1} parent=5 // pred_fallthru
        _
    $region6: #{tpu_custom_call.1} parent=1 // loop_footer
      %s19 = sadd.s32 1, %s15
    $region7: #{tpu_custom_call.1} parent=1 // loop_footer_branch
      %14 = sbr.rel target = $region3
    $region8: #{tpu_custom_call.1} parent=1 // loop_exit
      _
    %289 = vsyncpa [#allocation3], 1
    %s290 = scalar_lea.sflag [#allocation3], 1
    %291 = vsyncpa %s290, 1
    %292 = vsyncpa [#allocation6], 1
    %293 = vsyncpa [#allocation4], 1
    %s294 = scalar_lea.sflag [#allocation4], 1
    %295 = vsyncpa %s294, 1

</llo_original>
